<compile_context>
chip_gen: v5e
topology: v5e:2x2
jax: 0.10.0
libtpu: 0.0.40
codegen_flags: <defaults>
</compile_context>

<pallas_src>
import functools

import jax
import jax.numpy as jnp
from jax.experimental import pallas as pl
from jax.experimental.pallas import tpu as pltpu


# ----------------------------------------------------------------------------
# Pallas kernel: whole forward pass for one batch tile, transposed layout.
#   x_ref : (n_inputs,  TILE_B)
#   w*    : (out, in)        b* : (out, 1)
#   o_ref : (n_outputs, TILE_B)
# ----------------------------------------------------------------------------
def _disc_kernel(*refs, n_layers, use_softmax):
    if n_layers == 2:
        x_ref, w1_ref, b1_ref, w2_ref, b2_ref, o_ref = refs
        h = jnp.dot(w1_ref[...], x_ref[...],
                    preferred_element_type=jnp.float32) + b1_ref[...]
        h = jnp.maximum(h, 0.0)                               # ReLU
        logits = jnp.dot(w2_ref[...], h,
                         preferred_element_type=jnp.float32) + b2_ref[...]
    else:  # n_layers == 1
        x_ref, w1_ref, b1_ref, o_ref = refs
        logits = jnp.dot(w1_ref[...], x_ref[...],
                         preferred_element_type=jnp.float32) + b1_ref[...]

    if use_softmax:
        # softmax over the feature (sublane) axis == torch Softmax(dim=1)
        m = jnp.max(logits, axis=0, keepdims=True)
        e = jnp.exp(logits - m)
        s = jnp.sum(e, axis=0, keepdims=True)
        out = e * pl.reciprocal(s, approx=True)               # EUP, not VPU div
    else:
        # numerically-stable sigmoid (no exp overflow for large |logits|)
        z = jnp.exp(-jnp.abs(logits))
        r = pl.reciprocal(1.0 + z, approx=True)
        out = jnp.where(logits >= 0, r, z * r)

    o_ref[...] = out.astype(o_ref.dtype)


# ----------------------------------------------------------------------------
# Parameter init (PyTorch nn.Linear default: U(-1/sqrt(fan_in), 1/sqrt(fan_in)))
# Weights kept in PyTorch's (out, in) layout; biases as (out, 1).
# ----------------------------------------------------------------------------
def _init_linear(key, fan_in, fan_out):
    kw, kb = jax.random.split(key)
    bound = 1.0 / jnp.sqrt(float(fan_in))
    w = jax.random.uniform(kw, (fan_out, fan_in), jnp.float32, -bound, bound)
    b = jax.random.uniform(kb, (fan_out, 1), jnp.float32, -bound, bound)
    return w, b


def make_discriminator(n_layers, n_hidden_units, n_classes, n_sensitive_attrs,
                       EO_option=False, key=None, max_tile_b=512):
    """Builds params + a Pallas-backed forward fn mirroring the torch module."""
    if key is None:
        key = jax.random.PRNGKey(0)

    n_inputs = n_classes if n_classes > 2 else 1
    n_outputs = n_sensitive_attrs if n_sensitive_attrs > 2 else 1
    if EO_option:
        n_inputs = n_inputs + 1
    use_softmax = n_outputs > 1

    k1, k2 = jax.random.split(key)
    if n_layers == 1:
        w1, b1 = _init_linear(k1, n_inputs, n_outputs)
        params = (w1, b1)
    elif n_layers == 2:
        w1, b1 = _init_linear(k1, n_inputs, n_hidden_units)
        w2, b2 = _init_linear(k2, n_hidden_units, n_outputs)
        params = (w1, b1, w2, b2)
    else:
        raise ValueError("n_layers must be 1 or 2")

    kernel = functools.partial(_disc_kernel, n_layers=n_layers,
                               use_softmax=use_softmax)

    # resident (non-tiled) spec for weights / biases: same block every step
    def _resident_spec(arr):
        return pl.BlockSpec(arr.shape, lambda i: (0, 0))

    def forward(x):
        batch = x.shape[0]
        # lane axis tile: multiple of 128, capped at max_tile_b (VMEM-friendly
        # on v5e's 16 MiB scoped default and v7x's 64 MiB physical VMEM)
        tile_b = min(max_tile_b, pl.cdiv(batch, 128) * 128)
        b_pad = pl.cdiv(batch, tile_b) * tile_b

        # transpose to lane-dense layout and pad batch to a tile multiple
        x_t = jnp.transpose(x.astype(jnp.float32))            # (n_inputs, batch)
        if b_pad != batch:
            x_t = jnp.pad(x_t, ((0, 0), (0, b_pad - batch)))

        grid = (b_pad // tile_b,)

        in_specs = [pl.BlockSpec((n_inputs, tile_b), lambda i: (0, i))]
        in_specs += [_resident_spec(p) for p in params]
        out_spec = pl.BlockSpec((n_outputs, tile_b), lambda i: (0, i))

        if n_layers == 2:
            flops = 2 * b_pad * (n_inputs * n_hidden_units
                                 + n_hidden_units * n_outputs)
        else:
            flops = 2 * b_pad * n_inputs * n_outputs
        param_bytes = sum(p.size * 4 for p in params)
        cost = pl.CostEstimate(
            flops=flops,
            transcendentals=b_pad * n_outputs,
            bytes_accessed=4 * b_pad * (n_inputs + n_outputs) + param_bytes,
        )

        out_t = pl.pallas_call(
            kernel,
            out_shape=jax.ShapeDtypeStruct((n_outputs, b_pad), jnp.float32),
            grid=grid,
            in_specs=in_specs,
            out_specs=out_spec,
            compiler_params=pltpu.CompilerParams(
                dimension_semantics=("parallel",)),
            cost_estimate=cost,
        )(x_t, *params)

        # back to (batch, n_outputs), dropping padded rows
        return jnp.transpose(out_t)[:batch]

    return params, jax.jit(forward)


# Pure-JAX reference for verification (standard row-major layout)
def _reference(x, params, n_layers, use_softmax):
    if n_layers == 2:
        w1, b1, w2, b2 = params
        h = jnp.maximum(x @ w1.T + b1.T, 0.0)
        logits = h @ w2.T + b2.T
    else:
        w1, b1 = params
        logits = x @ w1.T + b1.T
    if use_softmax:
        return jax.nn.softmax(logits, axis=1)
    return jax.nn.sigmoid(logits)


if __name__ == "__main__":
    # Config consistent with the torch module:
    #   n_layers=2, n_hidden_units=32, n_classes=4 (>2 -> n_inputs=4),
    #   n_sensitive_attrs=3 (>2 -> n_outputs=3 -> Softmax(dim=1))
    n_layers, n_hidden_units, n_classes, n_sensitive_attrs = 2, 32, 4, 3

    key = jax.random.PRNGKey(0)
    kp, kx = jax.random.split(key)

    params, forward = make_discriminator(
        n_layers, n_hidden_units, n_classes, n_sensitive_attrs,
        EO_option=False, key=kp)

    batch = 8                         # deliberately not a multiple of the tile
    n_inputs = n_classes              # since n_classes > 2
    x = jax.random.normal(kx, (batch, n_inputs), jnp.float32)

    out = forward(x)
    jax.block_until_ready(out)

    ref = _reference(x, params, n_layers, use_softmax=True)
    assert out.shape == (batch, n_sensitive_attrs), out.shape
    # tolerance accounts for the approx (EUP) reciprocal in the softmax
    assert jnp.allclose(out, ref, atol=2e-3, rtol=2e-3), (
        "mismatch vs reference: max abs diff = "
        f"{float(jnp.max(jnp.abs(out - ref)))}")

    print("KERNEL_OK")
</pallas_src>

<mosaic_0001>
module attributes {stable_mosaic.version = 11 : i64} {
  func.func @_disc_kernel(%arg0: i32, %arg1: memref<4x128xf32, #tpu.memory_space<vmem>>, %arg2: memref<32x4xf32, #tpu.memory_space<vmem>>, %arg3: memref<32x1xf32, #tpu.memory_space<vmem>>, %arg4: memref<3x32xf32, #tpu.memory_space<vmem>>, %arg5: memref<3x1xf32, #tpu.memory_space<vmem>>, %arg6: memref<3x128xf32, #tpu.memory_space<vmem>>) attributes {dimension_semantics = [#tpu.dimension_semantics<parallel>], iteration_bounds = array<i64: 1>, scalar_prefetch = 0 : i64, scratch_operands = 0 : i64, tpu.core_type = #tpu.core_type<tc>, window_params = [{transform_indices = @transform_0, window_bounds = array<i64: 4, 128>}, {pipeline_mode = #tpu.pipeline_mode<synchronous>, transform_indices = @transform_1, window_bounds = array<i64: 32, 4>}, {pipeline_mode = #tpu.pipeline_mode<synchronous>, transform_indices = @transform_2, window_bounds = array<i64: 32, 1>}, {pipeline_mode = #tpu.pipeline_mode<synchronous>, transform_indices = @transform_3, window_bounds = array<i64: 3, 32>}, {pipeline_mode = #tpu.pipeline_mode<synchronous>, transform_indices = @transform_4, window_bounds = array<i64: 3, 1>}, {transform_indices = @transform_5, window_bounds = array<i64: 3, 128>}]} {
    %c0 = arith.constant 0 : index
    %c0_0 = arith.constant 0 : index
    %0 = vector.load %arg2[%c0, %c0_0] : memref<32x4xf32, #tpu.memory_space<vmem>>, vector<32x4xf32>
    %c0_1 = arith.constant 0 : index
    %c0_2 = arith.constant 0 : index
    %1 = vector.load %arg1[%c0_1, %c0_2] : memref<4x128xf32, #tpu.memory_space<vmem>>, vector<4x128xf32>
    %cst = arith.constant dense<0.000000e+00> : vector<32x128xf32>
    %2 = tpu.matmul %0, %1, %cst {dimension_numbers = #tpu.dot_dimension_numbers<[1], [0], [0], [1], [0, 0, 1, 1], [], []>} : vector<32x4xf32>, vector<4x128xf32>, vector<32x128xf32> -> vector<32x128xf32>
    %c0_3 = arith.constant 0 : index
    %c0_4 = arith.constant 0 : index
    %3 = vector.load %arg3[%c0_3, %c0_4] : memref<32x1xf32, #tpu.memory_space<vmem>>, vector<32x1xf32>
    %4 = vector.broadcast %3 : vector<32x1xf32> to vector<32x128xf32>
    %5 = arith.addf %2, %4 : vector<32x128xf32>
    %cst_5 = arith.constant 0.000000e+00 : f32
    %6 = vector.broadcast %cst_5 : f32 to vector<32x128xf32>
    %7 = arith.maximumf %5, %6 : vector<32x128xf32>
    %c0_6 = arith.constant 0 : index
    %c0_7 = arith.constant 0 : index
    %8 = vector.load %arg4[%c0_6, %c0_7] : memref<3x32xf32, #tpu.memory_space<vmem>>, vector<3x32xf32>
    %cst_8 = arith.constant dense<0.000000e+00> : vector<3x128xf32>
    %9 = tpu.matmul %8, %7, %cst_8 {dimension_numbers = #tpu.dot_dimension_numbers<[1], [0], [0], [1], [0, 0, 1, 1], [], []>} : vector<3x32xf32>, vector<32x128xf32>, vector<3x128xf32> -> vector<3x128xf32>
    %c0_9 = arith.constant 0 : index
    %c0_10 = arith.constant 0 : index
    %10 = vector.load %arg5[%c0_9, %c0_10] : memref<3x1xf32, #tpu.memory_space<vmem>>, vector<3x1xf32>
    %11 = vector.broadcast %10 : vector<3x1xf32> to vector<3x128xf32>
    %12 = arith.addf %9, %11 : vector<3x128xf32>
    %cst_11 = arith.constant dense<0xFF800000> : vector<128xf32>
    %13 = vector.multi_reduction <maximumf>, %12, %cst_11 [0] : vector<3x128xf32> to vector<128xf32>
    %14 = vector.shape_cast %13 : vector<128xf32> to vector<1x128xf32>
    %15 = vector.broadcast %14 : vector<1x128xf32> to vector<3x128xf32>
    %16 = arith.subf %12, %15 : vector<3x128xf32>
    %17 = math.exp %16 : vector<3x128xf32>
    %cst_12 = arith.constant dense<0.000000e+00> : vector<128xf32>
    %18 = vector.multi_reduction <add>, %17, %cst_12 [0] : vector<3x128xf32> to vector<128xf32>
    %19 = vector.shape_cast %18 : vector<128xf32> to vector<1x128xf32>
    %20 = tpu.reciprocal %19 {approx = true} : vector<1x128xf32> -> vector<1x128xf32>
    %21 = vector.broadcast %20 : vector<1x128xf32> to vector<3x128xf32>
    %22 = arith.mulf %17, %21 : vector<3x128xf32>
    %c0_13 = arith.constant 0 : index
    %c0_14 = arith.constant 0 : index
    %23 = vector.load %arg6[%c0_13, %c0_14] : memref<3x128xf32, #tpu.memory_space<vmem>>, vector<3x128xf32>
    tpu.vector_store %arg6[%c0_13, %c0_14], %22 {strides = array<i32>} : memref<3x128xf32, #tpu.memory_space<vmem>>, vector<3x128xf32>,
    return
  }
  func.func @transform_0(%arg0: i32) -> (i32, i32) {
    %c0_i32 = arith.constant 0 : i32
    %c0_i32_0 = arith.constant 0 : i32
    return %c0_i32, %arg0 : i32, i32
  }
  func.func @transform_1(%arg0: i32) -> (i32, i32) {
    %c0_i32 = arith.constant 0 : i32
    %c0_i32_0 = arith.constant 0 : i32
    %c0_i32_1 = arith.constant 0 : i32
    return %c0_i32, %c0_i32_0 : i32, i32
  }
  func.func @transform_2(%arg0: i32) -> (i32, i32) {
    %c0_i32 = arith.constant 0 : i32
    %c0_i32_0 = arith.constant 0 : i32
    %c0_i32_1 = arith.constant 0 : i32
    return %c0_i32, %c0_i32_0 : i32, i32
  }
  func.func @transform_3(%arg0: i32) -> (i32, i32) {
    %c0_i32 = arith.constant 0 : i32
    %c0_i32_0 = arith.constant 0 : i32
    %c0_i32_1 = arith.constant 0 : i32
    return %c0_i32, %c0_i32_0 : i32, i32
  }
  func.func @transform_4(%arg0: i32) -> (i32, i32) {
    %c0_i32 = arith.constant 0 : i32
    %c0_i32_0 = arith.constant 0 : i32
    %c0_i32_1 = arith.constant 0 : i32
    return %c0_i32, %c0_i32_0 : i32, i32
  }
  func.func @transform_5(%arg0: i32) -> (i32, i32) {
    %c0_i32 = arith.constant 0 : i32
    %c0_i32_0 = arith.constant 0 : i32
    return %c0_i32, %arg0 : i32, i32
  }
}

</mosaic_0001>

<llo_original>
// kernel: forward.1
$region0: #{forward.1}
  #allocation0 [shape = 'u32[]', space=smem, size = 0x4, offset = 0x4, fixed_abs, tag = 'smem constant byte address 0x4 - core index']
  #allocation1 [shape = 'u32[72,128]{1,0:T(1,128)}', space=vmem, size = 0x9000, scoped, tag = 'internal scratch']
  %s0 = inlined_call_operand.vmem [shape: f32[4,128], index: 0, kind: input, shape index: {}]
  %s1 = inlined_call_operand.hbm [shape: f32[32,4], index: 1, kind: input, shape index: {}]
  %s2 = inlined_call_operand.hbm [shape: f32[32,1], index: 2, kind: input, shape index: {}]
  %s3 = inlined_call_operand.vmem [shape: f32[3,32], index: 3, kind: input, shape index: {}]
  %s4 = inlined_call_operand.vmem [shape: f32[3,1], index: 4, kind: input, shape index: {}]
  %s5 = inlined_call_operand.hbm [shape: f32[3,128], index: 5, kind: output, shape index: {}]
  %s6 = sld [smem:[#allocation0]]
  $region38: #{forward.1} parent=0
    _
  %s8 = ssub.s32 1, %s6
  %s9 = scalar_select 0, %s8, %s6
  $region1: #{forward.1} parent=0
    #allocation2 [shape = 'u8[16384]{0}', space=vmem, size = 0x4000, scoped, tag = 'input window, operand 1, single buffered']
    #allocation3 [shape = 's32[1]{0}', space=sflag, size = 0x4, scoped, tag = 'scoped memory for forward.1']
    #allocation4 [shape = 's32[1]{0}', space=sflag, size = 0x4, scoped, tag = 'scoped memory for forward.1']
    #allocation5 [shape = 'u8[16384]{0}', space=vmem, size = 0x4000, scoped, tag = 'input window, operand 2, single buffered']
    #allocation6 [shape = 's32[1]{0}', space=sflag, size = 0x4, scoped, tag = 'scoped memory for forward.1']
    #allocation7 [shape = 'u8[2048]{0}', space=vmem, size = 0x800, scoped, tag = 'output window, operand 0, single buffered']
    %10 = vsyncpa [#allocation3], 0
    %11 = vsyncpa [#allocation6], 0
    %12 = vsyncpa [#allocation4], 0
    // Predicated region
    $region2: #{forward.1} parent=1 // pred_check
      _
    $region3: #{forward.1} parent=1 // pred_check_branch
      %14 = sbr.rel (0) target = $region5
    $region4: #{forward.1} parent=1 // pred_region
      _
    $region5: #{forward.1} parent=1 // pred_fallthru
      _
    // Predicated region
    $region6: #{forward.1} parent=1 // pred_check
      _
    $region7: #{forward.1} parent=1 // pred_check_branch
      %16 = sbr.rel (0) target = $region9
    $region8: #{forward.1} parent=1 // pred_region
      %18 = vsyncadd [#allocation3], 0
      %s19 = sshll.u32 %s1, 4
      %s20 = int_to_ptr.hbm [resolvable:$true] %s19
      %s21 = sshll.u32 [#allocation2], 4
      %s22 = int_to_ptr.vmem [resolvable:$true] %s21
      %27 = dma.hbm_to_vmem [thread:$0]  %s20, 512, %s22, [#allocation3], 128, 128, 8
    $region9: #{forward.1} parent=1 // pred_fallthru
      _
    // Predicated region
    $region10: #{forward.1} parent=1 // pred_check
      _
    $region11: #{forward.1} parent=1 // pred_check_branch
      %29 = sbr.rel (0) target = $region13
    $region12: #{forward.1} parent=1 // pred_region
      %31 = vsyncadd [#allocation6], 0
      %s32 = sshll.u32 %s2, 4
      %s33 = int_to_ptr.hbm [resolvable:$true] %s32
      %s34 = sshll.u32 [#allocation5], 4
      %s35 = int_to_ptr.vmem [resolvable:$true] %s34
      %40 = dma.hbm_to_vmem [thread:$0]  %s33, 512, %s35, [#allocation6], 128, 128, 8
    $region13: #{forward.1} parent=1 // pred_fallthru
      _
    // Predicated region
    $region14: #{forward.1} parent=1 // pred_check
      _
    $region15: #{forward.1} parent=1 // pred_check_branch
      %42 = sbr.rel (0) target = $region17
    $region16: #{forward.1} parent=1 // pred_region
      _
    $region17: #{forward.1} parent=1 // pred_fallthru
      _
    // Predicated region
    $region18: #{forward.1} parent=1 // pred_check
      _
    $region19: #{forward.1} parent=1 // pred_check_branch
      %44 = sbr.rel (0) target = $region21
    $region20: #{forward.1} parent=1 // pred_region
      _
    $region21: #{forward.1} parent=1 // pred_fallthru
      _
    // Predicated region
    $region22: #{forward.1} parent=1 // pred_check
      _
    $region23: #{forward.1} parent=1 // pred_check_branch
      %46 = sbr.rel (0) target = $region25
    $region24: #{forward.1} parent=1 // pred_region
      %48 = dma.done [#allocation3], 512
    $region25: #{forward.1} parent=1 // pred_fallthru
      _
    // Predicated region
    $region26: #{forward.1} parent=1 // pred_check
      _
    $region27: #{forward.1} parent=1 // pred_check_branch
      %50 = sbr.rel (0) target = $region29
    $region28: #{forward.1} parent=1 // pred_region
      %52 = dma.done [#allocation6], 512
    $region29: #{forward.1} parent=1 // pred_fallthru
      _
    %v53 = vld [vmem:[#allocation2] sm:$0xff]
    %v54 = vld [vmem:[#allocation2 + $0x8] sm:$0xff]
    %v55 = vld [vmem:[#allocation2 + $0x10] sm:$0xff]
    %v56 = vld [vmem:[#allocation2 + $0x18] sm:$0xff]
    %v57 = vld [vmem:[%s0] sm:$0xf]
    %v58 = vld [vmem:[#allocation5] sm:$0xff]
    %v59 = vld [vmem:[#allocation5 + $0x8] sm:$0xff]
    %v60 = vld [vmem:[#allocation5 + $0x10] sm:$0xff]
    %v61 = vld [vmem:[#allocation5 + $0x18] sm:$0xff]
    %63 = vset.pattern.permute.xlu0 0
    %64 = vperm.xlu0 %63, %v58
    %v65 = vpop.permute.xlu0 %64
    %68 = vset.pattern.permute.xlu0 0
    %69 = vperm.xlu0 %68, %v59
    %v70 = vpop.permute.xlu0 %69
    %73 = vset.pattern.permute.xlu0 0
    %74 = vperm.xlu0 %73, %v60
    %v75 = vpop.permute.xlu0 %74
    %78 = vset.pattern.permute.xlu0 0
    %79 = vperm.xlu0 %78, %v61
    %v80 = vpop.permute.xlu0 %79
    %vm82 = vcmask 31744
    %v84 = vsel %vm82, %v53, 0
    %v87 = vsel %vm82, %v54, 0
    %v90 = vsel %vm82, %v55, 0
    %v93 = vsel %vm82, %v56, 0
    %vm95 = vcmask 1043456
    %v97 = vsel %vm95, %v57, 0
    %99 = vmatpush.msra.mxu0 0.0
    %100 = vmatpush.msra.mxu0 0.0
    %101 = vmatpush.msra.mxu0 0.0
    %102 = vmatpush.msra.mxu0 0.0
    %103 = vmatpush.msra.mxu0 0.0
    %104 = vmatpush.msra.mxu0 0.0
    %105 = vmatpush.msra.mxu0 0.0
    %106 = vmatpush.msra.mxu0 0.0
    %107 = vmatpush.msra.mxu0 0.0
    %108 = vmatpush.msra.mxu0 0.0
    %109 = vmatpush.msra.mxu0 0.0
    %110 = vmatpush.msra.mxu0 0.0
    %111 = vmatpush.msra.mxu0 0.0
    %112 = vmatpush.msra.mxu0 0.0
    %113 = vmatpush.msra.mxu0 0.0
    %114 = vmatpush.msra.mxu0 %v97
    %115 = vmatmul.f32.gmra.mxu0 %v84
    %v116 = vpop.f32.mrf.mxu0
    %v117 = vadd.f32 %v65, %v116
    %118 = vmatmul.f32.gmra.mxu0 %v87
    %v119 = vpop.f32.mrf.mxu0
    %v120 = vadd.f32 %v70, %v119
    %121 = vmatmul.f32.gmra.mxu0 %v90
    %v122 = vpop.f32.mrf.mxu0
    %v123 = vadd.f32 %v75, %v122
    %124 = vmatmul.f32.gmra.mxu0 %v93
    %v125 = vpop.f32.mrf.mxu0
    %v126 = vadd.f32 %v80, %v125
    %127 = vdwg.mxu0
    %v128 = vmax.f32 %v117, 0.0
    %v129 = vmax.f32 %v120, 0.0
    %v130 = vmax.f32 %v123, 0.0
    %v131 = vmax.f32 %v126, 0.0
    %v132 = vld [vmem:[%s3] sm:$0x7]
    %v133 = vld [vmem:[%s4] sm:$0x7]
    %135 = vset.pattern.permute.xlu0 0
    %136 = vperm.xlu0 %135, %v133
    %v137 = vpop.permute.xlu0 %136
    %vm139 = vcmask 261120
    %v141 = vsel %vm139, %v132, 0
    %143 = vmatpush.msra.mxu0 0.0
    %144 = vmatpush.msra.mxu0 0.0
    %145 = vmatpush.msra.mxu0 0.0
    %146 = vmatpush.msra.mxu0 0.0
    %147 = vmatpush.msra.mxu0 0.0
    %148 = vmatpush.msra.mxu0 0.0
    %149 = vmatpush.msra.mxu0 0.0
    %150 = vmatpush.msra.mxu0 0.0
    %151 = vmatpush.msra.mxu0 0.0
    %152 = vmatpush.msra.mxu0 0.0
    %153 = vmatpush.msra.mxu0 0.0
    %154 = vmatpush.msra.mxu0 0.0
    %155 = vmatpush.msra.mxu0 %v131
    %156 = vmatpush.msra.mxu0 %v130
    %157 = vmatpush.msra.mxu0 %v129
    %158 = vmatpush.msra.mxu0 %v128
    %159 = vmatmul.f32.gmra.mxu0 %v141
    %v160 = vpop.f32.mrf.mxu0
    %v161 = vadd.f32 %v137, %v160
    %162 = vdwg.mxu0
    %vm163 = vcmask 1042432
    %v164 = vsel %vm163, %v161, -inf
    %v165 = vrot.slane %v164, 4
    %v166 = vmax.f32 %v164, %v165
    %v167 = vrot.slane %v166, 2
    %v168 = vmax.f32 %v166, %v167
    %v169 = vrot.slane %v168, 1
    %v170 = vmax.f32 %v168, %v169
    %v171 = vsub.f32 %v161, %v170
    %v172 = vmul.f32 %v171, 1.442695
    %v173 = vpow.pop %v172
    %v174 = vsel %vm163, %v173, 0.0
    %v175 = vrot.slane %v174, 4
    %v176 = vadd.f32 %v174, %v175
    %v177 = vrot.slane %v176, 2
    %v178 = vadd.f32 %v176, %v177
    %v179 = vrot.slane %v178, 1
    %v180 = vadd.f32 %v178, %v179
    %v181 = vrcp.pop %v180
    %v182 = vmul.f32 %v173, %v181
    %183 = vst [vmem:[#allocation7] sm:$0x7] %v182
    // Predicated region
    $region30: #{forward.1} parent=1 // pred_check
      _
    $region31: #{forward.1} parent=1 // pred_check_branch
      %185 = sbr.rel (0) target = $region33
    $region32: #{forward.1} parent=1 // pred_region
      %187 = vsyncadd [#allocation4], 0
      %s189 = sshll.u32 [#allocation7], 4
      %s190 = int_to_ptr.vmem [resolvable:$true] %s189
      %s191 = sshll.u32 %s5, 4
      %s192 = int_to_ptr.hbm [resolvable:$true] %s191
      %194 = dma.vmem_to_hbm [thread:$0]  %s190, 64, %s192, [#allocation4]
    $region33: #{forward.1} parent=1 // pred_fallthru
      _
    // Predicated region
    $region34: #{forward.1} parent=1 // pred_check
      _
    $region35: #{forward.1} parent=1 // pred_check_branch
      %196 = sbr.rel (0) target = $region37
    $region36: #{forward.1} parent=1 // pred_region
      %198 = dma.done [#allocation4], 64
    $region37: #{forward.1} parent=1 // pred_fallthru
      _
    %199 = vsyncpa [#allocation3], 1
    %200 = vsyncpa [#allocation6], 1
    %201 = vsyncpa [#allocation4], 1

</llo_original>
